<compile_context>
chip_gen: v7x
topology: tpu7x:2x2x1
jax: 0.10.0
libtpu: 0.0.40
codegen_flags: <defaults>
</compile_context>

<pallas_src>
import functools

import jax
import jax.numpy as jnp
from jax.experimental import pallas as pl
from jax.experimental.pallas import tpu as pltpu


# ----------------------------------------------------------------------------
# Kernels
# ----------------------------------------------------------------------------

def _excite(pooled, w1t_ref, b1_ref, w2t_ref, b2_ref):
    """fc1 -> relu -> fc2 -> sigmoid on (N, C) f32 raw spatial sums.

    The 1/HW of the average pool is pre-folded into w1t on the host, and the
    weights are consumed in their native dtype (f32 accumulation on the MXU).
    """
    h = jnp.dot(pooled, w1t_ref[...], preferred_element_type=jnp.float32)
    h = jnp.maximum(h + b1_ref[...], 0.0)
    s = jnp.dot(h, w2t_ref[...], preferred_element_type=jnp.float32)
    return jax.nn.sigmoid(s + b2_ref[...])


def se_kernel(x_ref, w1t_ref, b1_ref, w2t_ref, b2_ref, o_ref):
    """Single-pass SE: one block = tb whole images, (tb, C, HW)."""
    # f32 accumulation of the spatial sum; for f32 inputs the astype is a no-op,
    # so no f32 copy of the tile is materialized.
    # TODO(synk): for bf16 inputs, verify in the lowered MLIR that this stays a
    # fused vreg-level reduction; otherwise chunk it over pl.ds lane slices.
    pooled = jnp.sum(x_ref[...].astype(jnp.float32), axis=2)          # (tb, C)
    gate = _excite(pooled, w1t_ref, b1_ref, w2t_ref, b2_ref)          # (tb, C)
    o_ref[...] = x_ref[...] * gate.astype(o_ref.dtype)[:, :, None]


def se_pool_kernel(x_ref, pooled_ref, *, hw, thw):
    """Two-phase, phase 1: accumulate the raw spatial sum over HW tiles."""
    k = pl.program_id(0)

    @pl.when(k == 0)
    def _():
        pooled_ref[...] = jnp.zeros_like(pooled_ref)

    xf = x_ref[...].astype(jnp.float32)                               # (B, C, thw)
    if hw % thw != 0:
        # Mask the ragged last HW tile (out-of-bounds lanes are unspecified).
        pos = k * thw + jax.lax.broadcasted_iota(jnp.int32, xf.shape, 2)
        xf = jnp.where(pos < hw, xf, 0.0)
    pooled_ref[...] += jnp.sum(xf, axis=2)


def se_scale_kernel(pooled_ref, w1t_ref, b1_ref, w2t_ref, b2_ref, x_ref, o_ref):
    """Two-phase, phase 2: recompute the (tiny) gate and scale one HW tile.

    Recomputing the gate per tile keeps the grid axis 'parallel' (megacore) and
    costs only two tiny MXU matmuls per step, fully hidden under the x stream.
    """
    gate = _excite(pooled_ref[...], w1t_ref, b1_ref, w2t_ref, b2_ref)
    o_ref[...] = x_ref[...] * gate.astype(o_ref.dtype)[:, :, None]


# ----------------------------------------------------------------------------
# Wrapper
# ----------------------------------------------------------------------------

def _vmem_capacity_bytes():
    try:
        info = pltpu.get_tpu_info()
        for name in ("vmem_capacity_bytes", "vmem_bytes", "vmem_size_bytes"):
            v = getattr(info, name, None)
            if v:
                return int(v)
    except Exception:
        pass
    return 64 * 1024 * 1024  # conservative fallback (v7x per-core VMEM)


def _const_spec(shape, single_buffer):
    """BlockSpec for an array whose block never changes across the grid."""
    index_map = lambda *_: (0,) * len(shape)
    if single_buffer and hasattr(pl, "Buffered"):
        try:
            # Constant index_map -> no re-DMA between steps; single buffer is enough.
            return pl.BlockSpec(shape, index_map, pipeline_mode=pl.Buffered(1))
        except TypeError:
            pass
    return pl.BlockSpec(shape, index_map)


def se_forward(x, w1, b1, w2, b2, *, vmem_budget_override=None):
    """SE forward. x: (B, C, H, W); w1: (Cmid, C), b1: (Cmid,), w2: (C, Cmid), b2: (C,)."""
    B, C, H, W = x.shape
    HW = H * W
    Cmid = w1.shape[0]

    # Metadata-only reshape (trailing dims merge): lane axis = full HW, no padding.
    x_flat = x.reshape(B, C, HW)

    # Pre-transposed weights; fold the average-pool 1/HW into fc1.
    w1t = (w1.T * (1.0 / HW)).astype(w1.dtype)        # (C, Cmid)
    w2t = w2.T                                        # (Cmid, C)
    b1_2d = b1.reshape(1, Cmid)
    b2_2d = b2.reshape(1, C)

    itemsize = jnp.dtype(x.dtype).itemsize
    w_itemsize = jnp.dtype(w1.dtype).itemsize

    # Generation-aware VMEM budget (includes the weight/bias buffers).
    cap = _vmem_capacity_bytes()
    usable = min(int(cap * 0.70), 64 * 1024 * 1024)   # ~64 MiB v5e/v6e, ~45 MiB v7x
    if vmem_budget_override is not None:
        usable = int(vmem_budget_override)
    vmem_limit = int(min(cap, usable + 16 * 1024 * 1024))

    weight_bytes = 2 * (C * Cmid + Cmid + Cmid * C + C) * w_itemsize   # worst case: double-buffered
    bytes_per_image = 4 * C * HW * itemsize                            # in + out, double-buffered
    tb_fit = max(0, (usable - weight_bytes) // bytes_per_image)

    def run(single_buffer):
        if tb_fit >= 1:
            # ---------------- single-pass path ----------------
            target_steps = 8  # >= 2 for v7x megacore sharding, >= 4 for pipelining
            tb = int(max(1, min(tb_fit, pl.cdiv(B, target_steps), B)))
            grid = (pl.cdiv(B, tb),)  # cdiv grid: ragged last block is safe (row-wise gate)
            const_specs = [
                _const_spec((C, Cmid), single_buffer),
                _const_spec((1, Cmid), single_buffer),
                _const_spec((Cmid, C), single_buffer),
                _const_spec((1, C), single_buffer),
            ]
            return pl.pallas_call(
                se_kernel,
                out_shape=jax.ShapeDtypeStruct((B, C, HW), x.dtype),
                grid_spec=pltpu.PrefetchScalarGridSpec(
                    num_scalar_prefetch=0,
                    grid=grid,
                    in_specs=[pl.BlockSpec((tb, C, HW), lambda b: (b, 0, 0))] + const_specs,
                    out_specs=pl.BlockSpec((tb, C, HW), lambda b: (b, 0, 0)),
                ),
                compiler_params=pltpu.CompilerParams(
                    dimension_semantics=("parallel",),
                    vmem_limit_bytes=vmem_limit,
                ),
            )(x_flat, w1t, b1_2d, w2t, b2_2d)

        # ---------------- two-phase HW-tiled path ----------------
        # TODO(synk): also tile the batch axis here if B*C*128*itemsize itself
        # overflows VMEM (very large batch of very large images).
        bytes_per_lane = 4 * B * C * itemsize
        thw = max(128, ((usable - weight_bytes) // max(1, bytes_per_lane)) // 128 * 128)
        thw = min(thw, pl.cdiv(HW, 128) * 128)
        n_hw = pl.cdiv(HW, thw)

        pooled = pl.pallas_call(
            functools.partial(se_pool_kernel, hw=HW, thw=thw),
            out_shape=jax.ShapeDtypeStruct((B, C), jnp.float32),
            grid_spec=pltpu.PrefetchScalarGridSpec(
                num_scalar_prefetch=0,
                grid=(n_hw,),
                in_specs=[pl.BlockSpec((B, C, thw), lambda k: (0, 0, k))],
                out_specs=pl.BlockSpec((B, C), lambda k: (0, 0)),   # resident accumulator
            ),
            compiler_params=pltpu.CompilerParams(
                dimension_semantics=("arbitrary",),
                vmem_limit_bytes=vmem_limit,
            ),
        )(x_flat)

        const_specs = [
            _const_spec((B, C), single_buffer),
            _const_spec((C, Cmid), single_buffer),
            _const_spec((1, Cmid), single_buffer),
            _const_spec((Cmid, C), single_buffer),
            _const_spec((1, C), single_buffer),
        ]
        return pl.pallas_call(
            se_scale_kernel,
            out_shape=jax.ShapeDtypeStruct((B, C, HW), x.dtype),
            grid_spec=pltpu.PrefetchScalarGridSpec(
                num_scalar_prefetch=0,
                grid=(n_hw,),
                in_specs=const_specs + [pl.BlockSpec((B, C, thw), lambda k: (0, 0, k))],
                out_specs=pl.BlockSpec((B, C, thw), lambda k: (0, 0, k)),
            ),
            compiler_params=pltpu.CompilerParams(
                dimension_semantics=("parallel",),
                vmem_limit_bytes=vmem_limit,
            ),
        )(pooled, w1t, b1_2d, w2t, b2_2d, x_flat)

    try:
        out = run(single_buffer=True)
    except Exception:
        # Fallback if this jax/Mosaic version rejects pipeline_mode=pl.Buffered(1).
        out = run(single_buffer=False)

    return out.reshape(B, C, H, W)  # metadata-only split of the trailing dim


# ----------------------------------------------------------------------------
# Reference + tests
# ----------------------------------------------------------------------------

def se_reference(x, w1, b1, w2, b2):
    """Pure-JAX reference mirroring the PyTorch SE module."""
    pooled = jnp.mean(x, axis=(2, 3))                       # (B, C)
    h = jnp.maximum(pooled @ w1.T + b1, 0.0)                # (B, Cmid)
    s = jax.nn.sigmoid(h @ w2.T + b2)                       # (B, C)
    return x * s[:, :, None, None]


def _run_case(key, B, C, H, W, reduction=1, **kw):
    Cmid = max(1, C // reduction)
    k_x, k_w1, k_b1, k_w2, k_b2 = jax.random.split(key, 5)
    x = jax.random.normal(k_x, (B, C, H, W), dtype=jnp.float32)
    w1 = jax.random.normal(k_w1, (Cmid, C), dtype=jnp.float32) * 0.1
    b1 = jax.random.normal(k_b1, (Cmid,), dtype=jnp.float32) * 0.1
    w2 = jax.random.normal(k_w2, (C, Cmid), dtype=jnp.float32) * 0.1
    b2 = jax.random.normal(k_b2, (C,), dtype=jnp.float32) * 0.1

    out = jax.block_until_ready(se_forward(x, w1, b1, w2, b2, **kw))
    ref = se_reference(x, w1, b1, w2, b2)
    assert out.shape == (B, C, H, W)
    assert jnp.allclose(out, ref, atol=2e-5, rtol=2e-5), "mismatch vs reference"


if __name__ == "__main__":
    keys = jax.random.split(jax.random.PRNGKey(0), 4)

    # Primary case: HW = 256 (lane-dense), single-pass path.
    _run_case(keys[0], B=2, C=4, H=16, W=16, reduction=1)

    # Non-multiple-of-128 spatial size: no host padding, masked in-kernel access.
    _run_case(keys[1], B=2, C=8, H=7, W=7, reduction=1)

    # Ragged cdiv batch grid (B=9 -> tb=2, 5 steps, partial last block).
    _run_case(keys[2], B=9, C=8, H=8, W=8, reduction=2)

    # Two-phase HW-tiled path, forced via a tiny VMEM budget (ragged HW tile).
    _run_case(keys[3], B=2, C=8, H=15, W=15, reduction=1,
              vmem_budget_override=16 * 1024)

    print("KERNEL_OK")
</pallas_src>

<mosaic_0001>
module attributes {stable_mosaic.version = 11 : i64} {
  func.func @se_kernel(%arg0: i32, %arg1: memref<1x4x256xf32, #tpu.memory_space<vmem>>, %arg2: memref<4x4xf32, #tpu.memory_space<vmem>>, %arg3: memref<1x4xf32, #tpu.memory_space<vmem>>, %arg4: memref<4x4xf32, #tpu.memory_space<vmem>>, %arg5: memref<1x4xf32, #tpu.memory_space<vmem>>, %arg6: memref<1x4x256xf32, #tpu.memory_space<vmem>>) attributes {dimension_semantics = [#tpu.dimension_semantics<parallel>], iteration_bounds = array<i64: 2>, scalar_prefetch = 0 : i64, scratch_operands = 0 : i64, tpu.core_type = #tpu.core_type<tc>, window_params = [{transform_indices = @transform_0, window_bounds = array<i64: 1, 4, 256>}, {pipeline_mode = #tpu.pipeline_mode<synchronous>, transform_indices = @transform_1, window_bounds = array<i64: 4, 4>}, {pipeline_mode = #tpu.pipeline_mode<synchronous>, transform_indices = @transform_2, window_bounds = array<i64: 1, 4>}, {pipeline_mode = #tpu.pipeline_mode<synchronous>, transform_indices = @transform_3, window_bounds = array<i64: 4, 4>}, {pipeline_mode = #tpu.pipeline_mode<synchronous>, transform_indices = @transform_4, window_bounds = array<i64: 1, 4>}, {transform_indices = @transform_5, window_bounds = array<i64: 1, 4, 256>}]} {
    %c0 = arith.constant 0 : index
    %c0_0 = arith.constant 0 : index
    %c0_1 = arith.constant 0 : index
    %0 = vector.load %arg1[%c0, %c0_0, %c0_1] : memref<1x4x256xf32, #tpu.memory_space<vmem>>, vector<1x4x256xf32>
    %cst = arith.constant dense<0.000000e+00> : vector<1x4xf32>
    %1 = vector.multi_reduction <add>, %0, %cst [2] : vector<1x4x256xf32> to vector<1x4xf32>
    %c0_2 = arith.constant 0 : index
    %c0_3 = arith.constant 0 : index
    %2 = vector.load %arg2[%c0_2, %c0_3] : memref<4x4xf32, #tpu.memory_space<vmem>>, vector<4x4xf32>
    %cst_4 = arith.constant dense<0.000000e+00> : vector<1x4xf32>
    %3 = tpu.matmul %1, %2, %cst_4 {dimension_numbers = #tpu.dot_dimension_numbers<[1], [0], [0], [1], [0, 0, 1, 1], [], []>} : vector<1x4xf32>, vector<4x4xf32>, vector<1x4xf32> -> vector<1x4xf32>
    %c0_5 = arith.constant 0 : index
    %c0_6 = arith.constant 0 : index
    %4 = vector.load %arg3[%c0_5, %c0_6] : memref<1x4xf32, #tpu.memory_space<vmem>>, vector<1x4xf32>
    %5 = arith.addf %3, %4 : vector<1x4xf32>
    %cst_7 = arith.constant 0.000000e+00 : f32
    %6 = vector.broadcast %cst_7 : f32 to vector<1x4xf32>
    %7 = arith.maximumf %5, %6 : vector<1x4xf32>
    %c0_8 = arith.constant 0 : index
    %c0_9 = arith.constant 0 : index
    %8 = vector.load %arg4[%c0_8, %c0_9] : memref<4x4xf32, #tpu.memory_space<vmem>>, vector<4x4xf32>
    %cst_10 = arith.constant dense<0.000000e+00> : vector<1x4xf32>
    %9 = tpu.matmul %7, %8, %cst_10 {dimension_numbers = #tpu.dot_dimension_numbers<[1], [0], [0], [1], [0, 0, 1, 1], [], []>} : vector<1x4xf32>, vector<4x4xf32>, vector<1x4xf32> -> vector<1x4xf32>
    %c0_11 = arith.constant 0 : index
    %c0_12 = arith.constant 0 : index
    %10 = vector.load %arg5[%c0_11, %c0_12] : memref<1x4xf32, #tpu.memory_space<vmem>>, vector<1x4xf32>
    %11 = arith.addf %9, %10 : vector<1x4xf32>
    %12 = arith.negf %11 : vector<1x4xf32>
    %13 = math.exp %12 : vector<1x4xf32>
    %cst_13 = arith.constant 1.000000e+00 : f32
    %14 = vector.broadcast %cst_13 : f32 to vector<1x4xf32>
    %15 = arith.addf %14, %13 : vector<1x4xf32>
    %16 = arith.divf %14, %15 : vector<1x4xf32>
    %c0_14 = arith.constant 0 : index
    %c0_15 = arith.constant 0 : index
    %c0_16 = arith.constant 0 : index
    %17 = vector.load %arg1[%c0_14, %c0_15, %c0_16] : memref<1x4x256xf32, #tpu.memory_space<vmem>>, vector<1x4x256xf32>
    %18 = vector.shape_cast %16 : vector<1x4xf32> to vector<1x4x1xf32>
    %19 = vector.broadcast %18 : vector<1x4x1xf32> to vector<1x4x256xf32>
    %20 = arith.mulf %17, %19 : vector<1x4x256xf32>
    %c0_17 = arith.constant 0 : index
    %c0_18 = arith.constant 0 : index
    %c0_19 = arith.constant 0 : index
    %21 = vector.load %arg6[%c0_17, %c0_18, %c0_19] : memref<1x4x256xf32, #tpu.memory_space<vmem>>, vector<1x4x256xf32>
    tpu.vector_store %arg6[%c0_17, %c0_18, %c0_19], %20 {strides = array<i32>} : memref<1x4x256xf32, #tpu.memory_space<vmem>>, vector<1x4x256xf32>,
    return
  }
  func.func @transform_0(%arg0: i32) -> (i32, i32, i32) {
    %c0_i32 = arith.constant 0 : i32
    %c0_i32_0 = arith.constant 0 : i32
    %c0_i32_1 = arith.constant 0 : i32
    return %arg0, %c0_i32, %c0_i32_0 : i32, i32, i32
  }
  func.func @transform_1(%arg0: i32) -> (i32, i32) {
    %c0_i32 = arith.constant 0 : i32
    %c0_i32_0 = arith.constant 0 : i32
    %c0_i32_1 = arith.constant 0 : i32
    return %c0_i32, %c0_i32_0 : i32, i32
  }
  func.func @transform_2(%arg0: i32) -> (i32, i32) {
    %c0_i32 = arith.constant 0 : i32
    %c0_i32_0 = arith.constant 0 : i32
    %c0_i32_1 = arith.constant 0 : i32
    return %c0_i32, %c0_i32_0 : i32, i32
  }
  func.func @transform_3(%arg0: i32) -> (i32, i32) {
    %c0_i32 = arith.constant 0 : i32
    %c0_i32_0 = arith.constant 0 : i32
    %c0_i32_1 = arith.constant 0 : i32
    return %c0_i32, %c0_i32_0 : i32, i32
  }
  func.func @transform_4(%arg0: i32) -> (i32, i32) {
    %c0_i32 = arith.constant 0 : i32
    %c0_i32_0 = arith.constant 0 : i32
    %c0_i32_1 = arith.constant 0 : i32
    return %c0_i32, %c0_i32_0 : i32, i32
  }
  func.func @transform_5(%arg0: i32) -> (i32, i32, i32) {
    %c0_i32 = arith.constant 0 : i32
    %c0_i32_0 = arith.constant 0 : i32
    %c0_i32_1 = arith.constant 0 : i32
    return %arg0, %c0_i32, %c0_i32_0 : i32, i32, i32
  }
}

module attributes {stable_mosaic.version = 11 : i64} {
  func.func @se_kernel(%arg0: i32, %arg1: memref<1x4x256xf32, #tpu.memory_space<vmem>>, %arg2: memref<4x4xf32, #tpu.memory_space<vmem>>, %arg3: memref<1x4xf32, #tpu.memory_space<vmem>>, %arg4: memref<4x4xf32, #tpu.memory_space<vmem>>, %arg5: memref<1x4xf32, #tpu.memory_space<vmem>>, %arg6: memref<1x4x256xf32, #tpu.memory_space<vmem>>) attributes {dimension_semantics = [#tpu.dimension_semantics<parallel>], iteration_bounds = array<i64: 2>, scalar_prefetch = 0 : i64, scratch_operands = 0 : i64, tpu.core_type = #tpu.core_type<tc>, window_params = [{transform_indices = @transform_0, window_bounds = array<i64: 1, 4, 256>}, {pipeline_mode = #tpu.pipeline_mode<synchronous>, transform_indices = @transform_1, window_bounds = array<i64: 4, 4>}, {pipeline_mode = #tpu.pipeline_mode<synchronous>, transform_indices = @transform_2, window_bounds = array<i64: 1, 4>}, {pipeline_mode = #tpu.pipeline_mode<synchronous>, transform_indices = @transform_3, window_bounds = array<i64: 4, 4>}, {pipeline_mode = #tpu.pipeline_mode<synchronous>, transform_indices = @transform_4, window_bounds = array<i64: 1, 4>}, {transform_indices = @transform_5, window_bounds = array<i64: 1, 4, 256>}]} {
    %c0 = arith.constant 0 : index
    %c0_0 = arith.constant 0 : index
    %c0_1 = arith.constant 0 : index
    %0 = vector.load %arg1[%c0, %c0_0, %c0_1] : memref<1x4x256xf32, #tpu.memory_space<vmem>>, vector<1x4x256xf32>
    %cst = arith.constant dense<0.000000e+00> : vector<1x4xf32>
    %1 = vector.multi_reduction <add>, %0, %cst [2] : vector<1x4x256xf32> to vector<1x4xf32>
    %c0_2 = arith.constant 0 : index
    %c0_3 = arith.constant 0 : index
    %2 = vector.load %arg2[%c0_2, %c0_3] : memref<4x4xf32, #tpu.memory_space<vmem>>, vector<4x4xf32>
    %cst_4 = arith.constant dense<0.000000e+00> : vector<1x4xf32>
    %3 = tpu.matmul %1, %2, %cst_4 {dimension_numbers = #tpu.dot_dimension_numbers<[1], [0], [0], [1], [0, 0, 1, 1], [], []>} : vector<1x4xf32>, vector<4x4xf32>, vector<1x4xf32> -> vector<1x4xf32>
    %c0_5 = arith.constant 0 : index
    %c0_6 = arith.constant 0 : index
    %4 = vector.load %arg3[%c0_5, %c0_6] : memref<1x4xf32, #tpu.memory_space<vmem>>, vector<1x4xf32>
    %5 = arith.addf %3, %4 : vector<1x4xf32>
    %cst_7 = arith.constant 0.000000e+00 : f32
    %6 = vector.broadcast %cst_7 : f32 to vector<1x4xf32>
    %7 = arith.maximumf %5, %6 : vector<1x4xf32>
    %c0_8 = arith.constant 0 : index
    %c0_9 = arith.constant 0 : index
    %8 = vector.load %arg4[%c0_8, %c0_9] : memref<4x4xf32, #tpu.memory_space<vmem>>, vector<4x4xf32>
    %cst_10 = arith.constant dense<0.000000e+00> : vector<1x4xf32>
    %9 = tpu.matmul %7, %8, %cst_10 {dimension_numbers = #tpu.dot_dimension_numbers<[1], [0], [0], [1], [0, 0, 1, 1], [], []>} : vector<1x4xf32>, vector<4x4xf32>, vector<1x4xf32> -> vector<1x4xf32>
    %c0_11 = arith.constant 0 : index
    %c0_12 = arith.constant 0 : index
    %10 = vector.load %arg5[%c0_11, %c0_12] : memref<1x4xf32, #tpu.memory_space<vmem>>, vector<1x4xf32>
    %11 = arith.addf %9, %10 : vector<1x4xf32>
    %12 = arith.negf %11 : vector<1x4xf32>
    %13 = math.exp %12 : vector<1x4xf32>
    %cst_13 = arith.constant 1.000000e+00 : f32
    %14 = vector.broadcast %cst_13 : f32 to vector<1x4xf32>
    %15 = arith.addf %14, %13 : vector<1x4xf32>
    %16 = arith.divf %14, %15 : vector<1x4xf32>
    %c0_14 = arith.constant 0 : index
    %c0_15 = arith.constant 0 : index
    %c0_16 = arith.constant 0 : index
    %17 = vector.load %arg1[%c0_14, %c0_15, %c0_16] : memref<1x4x256xf32, #tpu.memory_space<vmem>>, vector<1x4x256xf32>
    %18 = vector.shape_cast %16 : vector<1x4xf32> to vector<1x4x1xf32>
    %19 = vector.broadcast %18 : vector<1x4x1xf32> to vector<1x4x256xf32>
    %20 = arith.mulf %17, %19 : vector<1x4x256xf32>
    %c0_17 = arith.constant 0 : index
    %c0_18 = arith.constant 0 : index
    %c0_19 = arith.constant 0 : index
    %21 = vector.load %arg6[%c0_17, %c0_18, %c0_19] : memref<1x4x256xf32, #tpu.memory_space<vmem>>, vector<1x4x256xf32>
    tpu.vector_store %arg6[%c0_17, %c0_18, %c0_19], %20 {strides = array<i32>} : memref<1x4x256xf32, #tpu.memory_space<vmem>>, vector<1x4x256xf32>,
    return
  }
  func.func @transform_0(%arg0: i32) -> (i32, i32, i32) {
    %c0_i32 = arith.constant 0 : i32
    %c0_i32_0 = arith.constant 0 : i32
    %c0_i32_1 = arith.constant 0 : i32
    return %arg0, %c0_i32, %c0_i32_0 : i32, i32, i32
  }
  func.func @transform_1(%arg0: i32) -> (i32, i32) {
    %c0_i32 = arith.constant 0 : i32
    %c0_i32_0 = arith.constant 0 : i32
    %c0_i32_1 = arith.constant 0 : i32
    return %c0_i32, %c0_i32_0 : i32, i32
  }
  func.func @transform_2(%arg0: i32) -> (i32, i32) {
    %c0_i32 = arith.constant 0 : i32
    %c0_i32_0 = arith.constant 0 : i32
    %c0_i32_1 = arith.constant 0 : i32
    return %c0_i32, %c0_i32_0 : i32, i32
  }
  func.func @transform_3(%arg0: i32) -> (i32, i32) {
    %c0_i32 = arith.constant 0 : i32
    %c0_i32_0 = arith.constant 0 : i32
    %c0_i32_1 = arith.constant 0 : i32
    return %c0_i32, %c0_i32_0 : i32, i32
  }
  func.func @transform_4(%arg0: i32) -> (i32, i32) {
    %c0_i32 = arith.constant 0 : i32
    %c0_i32_0 = arith.constant 0 : i32
    %c0_i32_1 = arith.constant 0 : i32
    return %c0_i32, %c0_i32_0 : i32, i32
  }
  func.func @transform_5(%arg0: i32) -> (i32, i32, i32) {
    %c0_i32 = arith.constant 0 : i32
    %c0_i32_0 = arith.constant 0 : i32
    %c0_i32_1 = arith.constant 0 : i32
    return %arg0, %c0_i32, %c0_i32_0 : i32, i32, i32
  }
}

</mosaic_0001>

<llo_original>
// kernel: tpu_custom_call.1
$region0: #{tpu_custom_call.1}
  #allocation0 [shape = 'u32[]', space=smem, size = 0x4, offset = 0x4, fixed_abs, tag = 'smem constant byte address 0x4 - core index']
  #allocation1 [shape = 'u32[144,128]{1,0:T(1,128)}', space=vmem, size = 0x12000, scoped, tag = 'internal scratch']
  %s0 = inlined_call_operand.hbm [shape: f32[2,4,256], index: 0, kind: input, shape index: {}]
  %s1 = inlined_call_operand.hbm [shape: f32[4,4], index: 1, kind: input, shape index: {}]
  %s2 = inlined_call_operand.vmem [shape: f32[1,4], index: 2, kind: input, shape index: {}]
  %s3 = inlined_call_operand.vmem [shape: f32[4,4], index: 3, kind: input, shape index: {}]
  %s4 = inlined_call_operand.vmem [shape: f32[1,4], index: 4, kind: input, shape index: {}]
  %s5 = inlined_call_operand.hbm [shape: f32[2,4,256], index: 5, kind: output, shape index: {}]
  %s6 = sld [smem:[#allocation0]]
  $region61: #{tpu_custom_call.1} parent=0
    _
  %s8 = ssub.s32 1, %s6
  %s9 = scalar_select 0, %s8, %s6
  $region1: #{tpu_custom_call.1} parent=0
    #allocation2 [shape = 'u8[8192]{0}', space=vmem, size = 0x2000, scoped, tag = 'input window, operand 0']
    #allocation3 [shape = 's32[2]{0}', space=sflag, size = 0x8, scoped, tag = 'scoped memory for tpu_custom_call.1']
    #allocation4 [shape = 's32[2]{0}', space=sflag, size = 0x8, scoped, tag = 'scoped memory for tpu_custom_call.1']
    #allocation5 [shape = 'u8[2048]{0}', space=vmem, size = 0x800, scoped, tag = 'input window, operand 1, single buffered']
    #allocation6 [shape = 's32[1]{0}', space=sflag, size = 0x4, scoped, tag = 'scoped memory for tpu_custom_call.1']
    #allocation7 [shape = 'u8[8192]{0}', space=vmem, size = 0x2000, scoped, tag = 'output window, operand 0']
    %10 = vsyncpa [#allocation3], 0
    %s11 = scalar_lea.sflag [#allocation3], 1
    %12 = vsyncpa %s11, 0
    %13 = vsyncpa [#allocation6], 0
    %14 = vsyncpa [#allocation4], 0
    %s15 = scalar_lea.sflag [#allocation4], 1
    %16 = vsyncpa %s15, 0
    loop: start=0, step=1, limit=4
    $region2: #{tpu_custom_call.1} parent=1 // loop_pre_header
      _
    $region3: #{tpu_custom_call.1} parent=1 // loop_header
      %s18 = sphi 0, %s22
      %p19 = scmp.ge.s32.totalorder %s18, 4
      %s28 = sphi 0, %s30
      %s31 = sphi 0, %s28
      %s32 = sphi 0, %s31
      %s48 = sphi 0, %s32
      %s52 = sphi 0, %s52
      %s54 = sphi 0, %s52
      %s55 = sphi 0, %s54
      %s69 = sphi 0, %s55
      %s73 = sphi 0, %s73
      %s75 = sphi 0, %s73
      %s76 = sphi 0, %s75
      %s90 = sphi 0, %s76
      %s94 = sphi 0, %s94
      %s96 = sphi 0, %s94
      %s97 = sphi 0, %s96
      %s111 = sphi 0, %s97
      %s115 = sphi 0, %s115
      %s117 = sphi 0, %s115
      %s118 = sphi 0, %s117
      %s132 = sphi 0, %s118
      %s138 = sphi 0, %s140
      %s141 = sphi 0, %s138
      %s142 = sphi 0, %s141
      %s158 = sphi 0, %s142
    $region4: #{tpu_custom_call.1} parent=1 // loop_header_branch
      %21 = sbr.rel (%p19) target = $region8
    $region5: #{tpu_custom_call.1} parent=1 // loop_body
      %s23 = ssub.s32 %s18, 1
      %s24 = ssub.s32 %s18, 2
      %s25 = sadd.s32 %s18, 1
      %s26 = ssub.s32 %s18, %s25
      %p27 = scmp.eq.s32.totalorder %s26, 0
      %s29 = sadd.s32 %s28, 1
      %s30 = scalar_select %p27, %s28, %s29
      %p33 = pneg %p27
      %p34 = scmp.eq.s32.totalorder %s18, 1
      %p35 = por %p33, %p34
      %p36 = scmp.ne.s32.totalorder %s28, %s31
      %p37 = scmp.eq.s32.totalorder %s18, 0
      %p38 = por %p36, %p37
      %p39 = scmp.ne.s32.totalorder %s28, %s31
      %p40 = scmp.eq.s32.totalorder %s23, 1
      %p41 = por %p39, %p40
      %p42 = scmp.ne.s32.totalorder %s31, %s32
      %p43 = scmp.eq.s32.totalorder %s23, 0
      %p44 = por %p42, %p43
      %p45 = scmp.ne.s32.totalorder %s31, %s32
      %p46 = scmp.eq.s32.totalorder %s24, 1
      %p47 = por %p45, %p46
      %p49 = scmp.ne.s32.totalorder %s32, %s48
      %p50 = scmp.eq.s32.totalorder %s24, 0
      %p51 = por %p49, %p50
      %s53 = sadd.s32 %s52, 1
      %p56 = scmp.eq.s32.totalorder %s18, 1
      %p57 = scmp.ne.s32.totalorder %s52, %s54
      %p58 = scmp.eq.s32.totalorder %s18, 0
      %p59 = por %p57, %p58
      %p60 = scmp.ne.s32.totalorder %s52, %s54
      %p61 = scmp.eq.s32.totalorder %s23, 1
      %p62 = por %p60, %p61
      %p63 = scmp.ne.s32.totalorder %s54, %s55
      %p64 = scmp.eq.s32.totalorder %s23, 0
      %p65 = por %p63, %p64
      %p66 = scmp.ne.s32.totalorder %s54, %s55
      %p67 = scmp.eq.s32.totalorder %s24, 1
      %p68 = por %p66, %p67
      %p70 = scmp.ne.s32.totalorder %s55, %s69
      %p71 = scmp.eq.s32.totalorder %s24, 0
      %p72 = por %p70, %p71
      %s74 = sadd.s32 %s73, 1
      %p77 = scmp.eq.s32.totalorder %s18, 1
      %p78 = scmp.ne.s32.totalorder %s73, %s75
      %p79 = scmp.eq.s32.totalorder %s18, 0
      %p80 = por %p78, %p79
      %p81 = scmp.ne.s32.totalorder %s73, %s75
      %p82 = scmp.eq.s32.totalorder %s23, 1
      %p83 = por %p81, %p82
      %p84 = scmp.ne.s32.totalorder %s75, %s76
      %p85 = scmp.eq.s32.totalorder %s23, 0
      %p86 = por %p84, %p85
      %p87 = scmp.ne.s32.totalorder %s75, %s76
      %p88 = scmp.eq.s32.totalorder %s24, 1
      %p89 = por %p87, %p88
      %p91 = scmp.ne.s32.totalorder %s76, %s90
      %p92 = scmp.eq.s32.totalorder %s24, 0
      %p93 = por %p91, %p92
      %s95 = sadd.s32 %s94, 1
      %p98 = scmp.eq.s32.totalorder %s18, 1
      %p99 = scmp.ne.s32.totalorder %s94, %s96
      %p100 = scmp.eq.s32.totalorder %s18, 0
      %p101 = por %p99, %p100
      %p102 = scmp.ne.s32.totalorder %s94, %s96
      %p103 = scmp.eq.s32.totalorder %s23, 1
      %p104 = por %p102, %p103
      %p105 = scmp.ne.s32.totalorder %s96, %s97
      %p106 = scmp.eq.s32.totalorder %s23, 0
      %p107 = por %p105, %p106
      %p108 = scmp.ne.s32.totalorder %s96, %s97
      %p109 = scmp.eq.s32.totalorder %s24, 1
      %p110 = por %p108, %p109
      %p112 = scmp.ne.s32.totalorder %s97, %s111
      %p113 = scmp.eq.s32.totalorder %s24, 0
      %p114 = por %p112, %p113
      %s116 = sadd.s32 %s115, 1
      %p119 = scmp.eq.s32.totalorder %s18, 1
      %p120 = scmp.ne.s32.totalorder %s115, %s117
      %p121 = scmp.eq.s32.totalorder %s18, 0
      %p122 = por %p120, %p121
      %p123 = scmp.ne.s32.totalorder %s115, %s117
      %p124 = scmp.eq.s32.totalorder %s23, 1
      %p125 = por %p123, %p124
      %p126 = scmp.ne.s32.totalorder %s117, %s118
      %p127 = scmp.eq.s32.totalorder %s23, 0
      %p128 = por %p126, %p127
      %p129 = scmp.ne.s32.totalorder %s117, %s118
      %p130 = scmp.eq.s32.totalorder %s24, 1
      %p131 = por %p129, %p130
      %p133 = scmp.ne.s32.totalorder %s118, %s132
      %p134 = scmp.eq.s32.totalorder %s24, 0
      %p135 = por %p133, %p134
      %s136 = ssub.s32 %s18, %s25
      %p137 = scmp.eq.s32.totalorder %s136, 0
      %s139 = sadd.s32 %s138, 1
      %s140 = scalar_select %p137, %s138, %s139
      %p143 = pneg %p137
      %p144 = scmp.eq.s32.totalorder %s18, 1
      %p145 = por %p143, %p144
      %p146 = scmp.ne.s32.totalorder %s138, %s141
      %p147 = scmp.eq.s32.totalorder %s18, 0
      %p148 = por %p146, %p147
      %p149 = scmp.ne.s32.totalorder %s138, %s141
      %p150 = scmp.eq.s32.totalorder %s23, 1
      %p151 = por %p149, %p150
      %p152 = scmp.ne.s32.totalorder %s141, %s142
      %p153 = scmp.eq.s32.totalorder %s23, 0
      %p154 = por %p152, %p153
      %p155 = scmp.ne.s32.totalorder %s141, %s142
      %p156 = scmp.eq.s32.totalorder %s24, 1
      %p157 = por %p155, %p156
      %p159 = scmp.ne.s32.totalorder %s142, %s158
      %p160 = scmp.eq.s32.totalorder %s24, 0
      %p161 = por %p159, %p160
      %p162 = scmp.le.s32.totalorder 1, %s18
      %p163 = scmp.lt.s32.totalorder %s18, 3
      %p164 = pnand %p162, %p163
      %p165 = pneg %p164
      // Predicated region
      $region9: #{tpu_custom_call.1} parent=5 // pred_check
        _
      $region10: #{tpu_custom_call.1} parent=5 // pred_check_branch
        %167 = sbr.rel (%p164) target = $region12
      $region11: #{tpu_custom_call.1} parent=5 // pred_region
        %s168 = ssub.s32 %s18, 1
        // Predicated region
        $region13: #{tpu_custom_call.1} parent=11 // pred_check
          %p169 = pneg %p65
        $region14: #{tpu_custom_call.1} parent=11 // pred_check_branch
          %171 = sbr.rel (%p169) target = $region16
        $region15: #{tpu_custom_call.1} parent=11 // pred_region
          %s173 = ssub.s32 64, 64
          %174 = vsyncadd [#allocation6], %s173
          %s176 = sshll.u32 [#allocation5], 4
          %s177 = int_to_ptr.vmem [resolvable:$true] %s176
          %179 = dma.hbm_to_vmem [thread:$0]  %s1, 64, %s177, [#allocation6]
        $region16: #{tpu_custom_call.1} parent=11 // pred_fallthru
          _
        // Predicated region
        $region17: #{tpu_custom_call.1} parent=11 // pred_check
          %p180 = pneg %p86
        $region18: #{tpu_custom_call.1} parent=11 // pred_check_branch
          %182 = sbr.rel (%p180) target = $region20
        $region19: #{tpu_custom_call.1} parent=11 // pred_region
          _
        $region20: #{tpu_custom_call.1} parent=11 // pred_fallthru
          _
        // Predicated region
        $region21: #{tpu_custom_call.1} parent=11 // pred_check
          %p183 = pneg %p107
        $region22: #{tpu_custom_call.1} parent=11 // pred_check_branch
          %185 = sbr.rel (%p183) target = $region24
        $region23: #{tpu_custom_call.1} parent=11 // pred_region
          _
        $region24: #{tpu_custom_call.1} parent=11 // pred_fallthru
          _
        // Predicated region
        $region25: #{tpu_custom_call.1} parent=11 // pred_check
          %p186 = pneg %p128
        $region26: #{tpu_custom_call.1} parent=11 // pred_check_branch
          %188 = sbr.rel (%p186) target = $region28
        $region27: #{tpu_custom_call.1} parent=11 // pred_region
          _
        $region28: #{tpu_custom_call.1} parent=11 // pred_fallthru
          _
      $region12: #{tpu_custom_call.1} parent=5 // pred_fallthru
        _
      %p189 = scmp.lt.s32.totalorder %s18, 2
      // Predicated region
      $region29: #{tpu_custom_call.1} parent=5 // pred_check
        %p190 = pneg %p189
      $region30: #{tpu_custom_call.1} parent=5 // pred_check_branch
        %192 = sbr.rel (%p190) target = $region32
      $region31: #{tpu_custom_call.1} parent=5 // pred_region
        // Predicated region
        $region33: #{tpu_custom_call.1} parent=31 // pred_check
          %p193 = pneg %p38
        $region34: #{tpu_custom_call.1} parent=31 // pred_check_branch
          %195 = sbr.rel (%p193) target = $region36
        $region35: #{tpu_custom_call.1} parent=31 // pred_region
          %s196 = sand.u32 %s28, 1
          %s197 = scalar_lea.sflag [#allocation3], %s196
          %s198 = sand.u32 %s28, 1
          %s199 = smul.addr %s198, 8
          %s200 = scalar_lea.vmem [#allocation2], %s199
          %s202 = ssub.s32 128, 128
          %203 = vsyncadd %s197, %s202
          %s204 = smul.addr %s18, 2
          %s205 = smul.addr %s204, 64
          %s206 = scalar_lea.hbm %s0, %s205
          %s208 = sshll.u32 %s200, 4
          %s209 = int_to_ptr.vmem [resolvable:$true] %s208
          %211 = dma.hbm_to_vmem [thread:$0]  %s206, 128, %s209, %s197
        $region36: #{tpu_custom_call.1} parent=31 // pred_fallthru
          _
      $region32: #{tpu_custom_call.1} parent=5 // pred_fallthru
        _
      %p212 = scmp.le.s32.totalorder 1, %s18
      %p213 = scmp.lt.s32.totalorder %s18, 3
      %p214 = pnand %p212, %p213
      %p215 = pneg %p214
      // Predicated region
      $region37: #{tpu_custom_call.1} parent=5 // pred_check
        _
      $region38: #{tpu_custom_call.1} parent=5 // pred_check_branch
        %217 = sbr.rel (%p214) target = $region40
      $region39: #{tpu_custom_call.1} parent=5 // pred_region
        %s218 = ssub.s32 %s18, 1
        %s219 = sand.u32 %s31, 1
        %s220 = scalar_lea.sflag [#allocation3], %s219
        %s221 = sand.u32 %s31, 1
        %s222 = smul.addr %s221, 8
        %s223 = scalar_lea.vmem [#allocation2], %s222
        // Predicated region
        $region41: #{tpu_custom_call.1} parent=39 // pred_check
          %p224 = pneg %p44
        $region42: #{tpu_custom_call.1} parent=39 // pred_check_branch
          %226 = sbr.rel (%p224) target = $region44
        $region43: #{tpu_custom_call.1} parent=39 // pred_region
          %227 = dma.done %s220, 128
        $region44: #{tpu_custom_call.1} parent=39 // pred_fallthru
          _
        // Predicated region
        $region45: #{tpu_custom_call.1} parent=39 // pred_check
          %p228 = pneg %p65
        $region46: #{tpu_custom_call.1} parent=39 // pred_check_branch
          %230 = sbr.rel (%p228) target = $region48
        $region47: #{tpu_custom_call.1} parent=39 // pred_region
          %231 = dma.done [#allocation6], 64
        $region48: #{tpu_custom_call.1} parent=39 // pred_fallthru
          _
        %s232 = sand.u32 %s31, 1
        %s233 = scalar_lea.sflag [#allocation3], %s232
        %s234 = sand.u32 %s31, 1
        %s235 = smul.addr %s234, 8
        %s236 = scalar_lea.vmem [#allocation2], %s235
        %p237 = pneg %p44
        %p238 = pneg %p41
        %p239 = pneg %p65
        %p240 = pneg %p62
        %p241 = pneg %p86
        %p242 = pneg %p83
        %p243 = pneg %p107
        %p244 = pneg %p104
        %p245 = pneg %p128
        %p246 = pneg %p125
        %p247 = pneg %p154
        %p248 = pneg %p151
        %s249 = sand.u32 %s141, 1
        %s250 = scalar_lea.sflag [#allocation4], %s249
        %s251 = sand.u32 %s141, 1
        %s252 = smul.addr %s251, 8
        %s253 = scalar_lea.vmem [#allocation7], %s252
        %v254 = vld [vmem:[%s223] sm:$0xff]
        %v256 = vcombine.high %v254, %v254
        %vm258 = vcmask 1043456
        %v259 = vsel %vm258, %v254, 0.0
        %v260 = vsel %vm258, %v256, 0.0
        %v261 = vadd.f32 %v259, %v260
        %262 = vadd.xlane.f32.xlu0 %v261
        %v263 = vpop.xlane.xlu0 %262
        %v264 = vld [vmem:[#allocation5] sm:$0xf]
        %v265 = vld [vmem:[%s2] sm:$0x1]
        %v267 = vlaneseq
        %v268 = vand.u32 %v267, 127
        %v269 = vlaneseq
        %v270 = vshrl.u32 %v269, 7
        %v271 = vsub.s32 %v268, %v270
        %v272 = vrot.slane %v263, %v271
        %vm273 = vcmask 31744
        %v274 = vsel %vm273, %v272, 0
        %v277 = vsel %vm258, %v264, 0
        %279 = vmatprep.subr.mxu0 0.0
        %280 = vmatpush1.msra.mxu0 %v277
        %281 = vmatprep.subr.mxu0 0.0
        %282 = vmatpush1.msra.mxu0 0.0
        %283 = vmatprep.subr.mxu0 0.0
        %284 = vmatpush1.msra.mxu0 0.0
        %285 = vmatprep.subr.mxu0 0.0
        %286 = vmatpush1.msra.mxu0 0.0
        %287 = vmatprep.subr.mxu0 0.0
        %288 = vmatpush1.msra.mxu0 0.0
        %289 = vmatprep.subr.mxu0 0.0
        %290 = vmatpush1.msra.mxu0 0.0
        %291 = vmatprep.subr.mxu0 0.0
        %292 = vmatpush1.msra.mxu0 0.0
        %293 = vmatprep.subr.mxu0 0.0
        %294 = vmatpush1.msra.mxu0 0.0
        %295 = vmatprep.subr.mxu0 0.0
        %296 = vmatpush1.msra.mxu0 0.0
        %297 = vmatprep.subr.mxu0 0.0
        %298 = vmatpush1.msra.mxu0 0.0
        %299 = vmatprep.subr.mxu0 0.0
        %300 = vmatpush1.msra.mxu0 0.0
        %301 = vmatprep.subr.mxu0 0.0
        %302 = vmatpush1.msra.mxu0 0.0
        %303 = vmatprep.subr.mxu0 0.0
        %304 = vmatpush1.msra.mxu0 0.0
        %305 = vmatprep.subr.mxu0 0.0
        %306 = vmatpush1.msra.mxu0 0.0
        %307 = vmatprep.subr.mxu0 0.0
        %308 = vmatpush1.msra.mxu0 0.0
        %309 = vmatprep.subr.mxu0 0.0
        %310 = vmatpush1.msra.mxu0 0.0
        %311 = vmatprep.subr.mxu0 0.0
        %312 = vmatpush1.msra.mxu0 0.0
        %313 = vmatprep.subr.mxu0 0.0
        %314 = vmatpush1.msra.mxu0 0.0
        %315 = vmatprep.subr.mxu0 0.0
        %316 = vmatpush1.msra.mxu0 0.0
        %317 = vmatprep.subr.mxu0 0.0
        %318 = vmatpush1.msra.mxu0 0.0
        %319 = vmatprep.subr.mxu0 0.0
        %320 = vmatpush1.msra.mxu0 0.0
        %321 = vmatprep.subr.mxu0 0.0
        %322 = vmatpush1.msra.mxu0 0.0
        %323 = vmatprep.subr.mxu0 0.0
        %324 = vmatpush1.msra.mxu0 0.0
        %325 = vmatprep.subr.mxu0 0.0
        %326 = vmatpush1.msra.mxu0 0.0
        %327 = vmatprep.subr.mxu0 0.0
        %328 = vmatpush1.msra.mxu0 0.0
        %329 = vmatprep.subr.mxu0 0.0
        %330 = vmatpush1.msra.mxu0 0.0
        %331 = vmatprep.subr.mxu0 0.0
        %332 = vmatpush1.msra.mxu0 0.0
        %333 = vmatprep.subr.mxu0 0.0
        %334 = vmatpush1.msra.mxu0 0.0
        %335 = vmatprep.subr.mxu0 0.0
        %336 = vmatpush1.msra.mxu0 0.0
        %337 = vmatprep.subr.mxu0 0.0
        %338 = vmatpush1.msra.mxu0 0.0
        %339 = vmatprep.subr.mxu0 0.0
        %340 = vmatpush1.msra.mxu0 0.0
        %341 = vmatprep.subr.mxu0 0.0
        %342 = vmatpush1.msra.mxu0 0.0
        %343 = vmatprep.mubr.f32.mxu0 0.0
        %344 = vmatmul.mubr.f32.gmra.mrb[0].mxu0 %v274
        %v345 = vpop.f32.mrb[0].mxu0
        %v346 = vadd.f32 %v265, %v345
        %v347 = vpop.f32.mrb[0].mxu0
        %348 = vdwg.mxu0
        %v349 = vmax.f32 %v346, 0.0
        %v350 = vld [vmem:[%s3] sm:$0xf]
        %v351 = vld [vmem:[%s4] sm:$0x1]
        %v353 = vsel %vm273, %v349, 0
        %v356 = vsel %vm258, %v350, 0
        %358 = vmatprep.subr.mxu0 0.0
        %359 = vmatpush1.msra.mxu0 %v356
        %360 = vmatprep.subr.mxu0 0.0
        %361 = vmatpush1.msra.mxu0 0.0
        %362 = vmatprep.subr.mxu0 0.0
        %363 = vmatpush1.msra.mxu0 0.0
        %364 = vmatprep.subr.mxu0 0.0
        %365 = vmatpush1.msra.mxu0 0.0
        %366 = vmatprep.subr.mxu0 0.0
        %367 = vmatpush1.msra.mxu0 0.0
        %368 = vmatprep.subr.mxu0 0.0
        %369 = vmatpush1.msra.mxu0 0.0
        %370 = vmatprep.subr.mxu0 0.0
        %371 = vmatpush1.msra.mxu0 0.0
        %372 = vmatprep.subr.mxu0 0.0
        %373 = vmatpush1.msra.mxu0 0.0
        %374 = vmatprep.subr.mxu0 0.0
        %375 = vmatpush1.msra.mxu0 0.0
        %376 = vmatprep.subr.mxu0 0.0
        %377 = vmatpush1.msra.mxu0 0.0
        %378 = vmatprep.subr.mxu0 0.0
        %379 = vmatpush1.msra.mxu0 0.0
        %380 = vmatprep.subr.mxu0 0.0
        %381 = vmatpush1.msra.mxu0 0.0
        %382 = vmatprep.subr.mxu0 0.0
        %383 = vmatpush1.msra.mxu0 0.0
        %384 = vmatprep.subr.mxu0 0.0
        %385 = vmatpush1.msra.mxu0 0.0
        %386 = vmatprep.subr.mxu0 0.0
        %387 = vmatpush1.msra.mxu0 0.0
        %388 = vmatprep.subr.mxu0 0.0
        %389 = vmatpush1.msra.mxu0 0.0
        %390 = vmatprep.subr.mxu0 0.0
        %391 = vmatpush1.msra.mxu0 0.0
        %392 = vmatprep.subr.mxu0 0.0
        %393 = vmatpush1.msra.mxu0 0.0
        %394 = vmatprep.subr.mxu0 0.0
        %395 = vmatpush1.msra.mxu0 0.0
        %396 = vmatprep.subr.mxu0 0.0
        %397 = vmatpush1.msra.mxu0 0.0
        %398 = vmatprep.subr.mxu0 0.0
        %399 = vmatpush1.msra.mxu0 0.0
        %400 = vmatprep.subr.mxu0 0.0
        %401 = vmatpush1.msra.mxu0 0.0
        %402 = vmatprep.subr.mxu0 0.0
        %403 = vmatpush1.msra.mxu0 0.0
        %404 = vmatprep.subr.mxu0 0.0
        %405 = vmatpush1.msra.mxu0 0.0
        %406 = vmatprep.subr.mxu0 0.0
        %407 = vmatpush1.msra.mxu0 0.0
        %408 = vmatprep.subr.mxu0 0.0
        %409 = vmatpush1.msra.mxu0 0.0
        %410 = vmatprep.subr.mxu0 0.0
        %411 = vmatpush1.msra.mxu0 0.0
        %412 = vmatprep.subr.mxu0 0.0
        %413 = vmatpush1.msra.mxu0 0.0
        %414 = vmatprep.subr.mxu0 0.0
        %415 = vmatpush1.msra.mxu0 0.0
        %416 = vmatprep.subr.mxu0 0.0
        %417 = vmatpush1.msra.mxu0 0.0
        %418 = vmatprep.subr.mxu0 0.0
        %419 = vmatpush1.msra.mxu0 0.0
        %420 = vmatprep.subr.mxu0 0.0
        %421 = vmatpush1.msra.mxu0 0.0
        %422 = vmatprep.mubr.f32.mxu0 0.0
        %423 = vmatmul.mubr.f32.gmra.mrb[0].mxu0 %v353
        %v424 = vpop.f32.mrb[0].mxu0
        %v425 = vadd.f32 %v351, %v424
        %v426 = vpop.f32.mrb[0].mxu0
        %427 = vdwg.mxu0
        %v428 = vxor.u32 %v425, 2147483648
        %v429 = vmul.f32 %v428, 1.442695
        %v430 = vpow.pop %v429
        %v431 = vadd.f32 %v430, 1.0
        %v432 = vrcp.pop %v431
        %v433 = vmul.f32 1.0, %v432
        %v434 = vlaneseq
        %v435 = vshrl.u32 %v434, 7
        %v436 = vsub.s32 0, %v435
        %v437 = vrot.slane %v433, %v436
        %439 = vbcast.lane.b32.xlu0 %v437, 256
        %v440 = vpop.permute.xlu0 %439
        %v443 = vunpack.c.l.s4 839922192
        %v444 = vunpack.c.0.s8 %v443
        %v445 = vlaneseq
        %v446 = vshrl.u32 %v445, 7
        %v447 = vsub.s32 %v444, %v446
        %v448 = vrot.slane %v440, %v447
        %v450 = vmul.f32 %v254, %v448
        %451 = vst [vmem:[%s253] sm:$0xff] %v450
        %s452 = sand.u32 %s141, 1
        %s453 = scalar_lea.sflag [#allocation4], %s452
        %s454 = sand.u32 %s141, 1
        %s455 = smul.addr %s454, 8
        %s456 = scalar_lea.vmem [#allocation7], %s455
        // Predicated region
        $region49: #{tpu_custom_call.1} parent=39 // pred_check
          %p457 = pneg %p151
        $region50: #{tpu_custom_call.1} parent=39 // pred_check_branch
          %459 = sbr.rel (%p457) target = $region52
        $region51: #{tpu_custom_call.1} parent=39 // pred_region
          %s461 = ssub.s32 128, 128
          %462 = vsyncadd %s453, %s461
          %s463 = smul.addr %s23, 2
          %s464 = smul.addr %s463, 64
          %s465 = scalar_lea.hbm %s5, %s464
          %s467 = sshll.u32 %s456, 4
          %s468 = int_to_ptr.vmem [resolvable:$true] %s467
          %470 = dma.vmem_to_hbm [thread:$0]  %s468, 128, %s465, %s453
        $region52: #{tpu_custom_call.1} parent=39 // pred_fallthru
          _
      $region40: #{tpu_custom_call.1} parent=5 // pred_fallthru
        _
      %p471 = scmp.le.s32.totalorder 2, %s18
      // Predicated region
      $region53: #{tpu_custom_call.1} parent=5 // pred_check
        %p472 = pneg %p471
      $region54: #{tpu_custom_call.1} parent=5 // pred_check_branch
        %474 = sbr.rel (%p472) target = $region56
      $region55: #{tpu_custom_call.1} parent=5 // pred_region
        %s475 = ssub.s32 %s18, 2
        // Predicated region
        $region57: #{tpu_custom_call.1} parent=55 // pred_check
          %p476 = pneg %p157
        $region58: #{tpu_custom_call.1} parent=55 // pred_check_branch
          %478 = sbr.rel (%p476) target = $region60
        $region59: #{tpu_custom_call.1} parent=55 // pred_region
          %s479 = sand.u32 %s142, 1
          %s480 = scalar_lea.sflag [#allocation4], %s479
          %s481 = sand.u32 %s142, 1
          %s482 = smul.addr %s481, 8
          %s483 = scalar_lea.vmem [#allocation7], %s482
          %484 = dma.done %s480, 128
        $region60: #{tpu_custom_call.1} parent=55 // pred_fallthru
          _
      $region56: #{tpu_custom_call.1} parent=5 // pred_fallthru
        _
    $region6: #{tpu_custom_call.1} parent=1 // loop_footer
      %s22 = sadd.s32 1, %s18
    $region7: #{tpu_custom_call.1} parent=1 // loop_footer_branch
      %17 = sbr.rel target = $region3
    $region8: #{tpu_custom_call.1} parent=1 // loop_exit
      _
    %485 = vsyncpa [#allocation3], 1
    %s486 = scalar_lea.sflag [#allocation3], 1
    %487 = vsyncpa %s486, 1
    %488 = vsyncpa [#allocation6], 1
    %489 = vsyncpa [#allocation4], 1
    %s490 = scalar_lea.sflag [#allocation4], 1
    %491 = vsyncpa %s490, 1

// kernel: tpu_custom_call.1
$region0: #{tpu_custom_call.1}
  #allocation0 [shape = 'u32[]', space=smem, size = 0x4, offset = 0x4, fixed_abs, tag = 'smem constant byte address 0x4 - core index']
  #allocation1 [shape = 'u32[144,128]{1,0:T(1,128)}', space=vmem, size = 0x12000, scoped, tag = 'internal scratch']
  %s0 = inlined_call_operand.hbm [shape: f32[2,4,256], index: 0, kind: input, shape index: {}]
  %s1 = inlined_call_operand.hbm [shape: f32[4,4], index: 1, kind: input, shape index: {}]
  %s2 = inlined_call_operand.vmem [shape: f32[1,4], index: 2, kind: input, shape index: {}]
  %s3 = inlined_call_operand.vmem [shape: f32[4,4], index: 3, kind: input, shape index: {}]
  %s4 = inlined_call_operand.vmem [shape: f32[1,4], index: 4, kind: input, shape index: {}]
  %s5 = inlined_call_operand.hbm [shape: f32[2,4,256], index: 5, kind: output, shape index: {}]
  %s6 = sld [smem:[#allocation0]]
  $region61: #{tpu_custom_call.1} parent=0
    _
  %s8 = ssub.s32 1, %s6
  %s9 = scalar_select 0, %s8, %s6
  $region1: #{tpu_custom_call.1} parent=0
    #allocation2 [shape = 'u8[8192]{0}', space=vmem, size = 0x2000, scoped, tag = 'input window, operand 0']
    #allocation3 [shape = 's32[2]{0}', space=sflag, size = 0x8, scoped, tag = 'scoped memory for tpu_custom_call.1']
    #allocation4 [shape = 's32[2]{0}', space=sflag, size = 0x8, scoped, tag = 'scoped memory for tpu_custom_call.1']
    #allocation5 [shape = 'u8[2048]{0}', space=vmem, size = 0x800, scoped, tag = 'input window, operand 1, single buffered']
    #allocation6 [shape = 's32[1]{0}', space=sflag, size = 0x4, scoped, tag = 'scoped memory for tpu_custom_call.1']
    #allocation7 [shape = 'u8[8192]{0}', space=vmem, size = 0x2000, scoped, tag = 'output window, operand 0']
    %10 = vsyncpa [#allocation3], 0
    %s11 = scalar_lea.sflag [#allocation3], 1
    %12 = vsyncpa %s11, 0
    %13 = vsyncpa [#allocation6], 0
    %14 = vsyncpa [#allocation4], 0
    %s15 = scalar_lea.sflag [#allocation4], 1
    %16 = vsyncpa %s15, 0
    loop: start=0, step=1, limit=4
    $region2: #{tpu_custom_call.1} parent=1 // loop_pre_header
      _
    $region3: #{tpu_custom_call.1} parent=1 // loop_header
      %s18 = sphi 0, %s22
      %p19 = scmp.ge.s32.totalorder %s18, 4
      %s28 = sphi 0, %s30
      %s31 = sphi 0, %s28
      %s32 = sphi 0, %s31
      %s48 = sphi 0, %s32
      %s52 = sphi 0, %s52
      %s54 = sphi 0, %s52
      %s55 = sphi 0, %s54
      %s69 = sphi 0, %s55
      %s73 = sphi 0, %s73
      %s75 = sphi 0, %s73
      %s76 = sphi 0, %s75
      %s90 = sphi 0, %s76
      %s94 = sphi 0, %s94
      %s96 = sphi 0, %s94
      %s97 = sphi 0, %s96
      %s111 = sphi 0, %s97
      %s115 = sphi 0, %s115
      %s117 = sphi 0, %s115
      %s118 = sphi 0, %s117
      %s132 = sphi 0, %s118
      %s138 = sphi 0, %s140
      %s141 = sphi 0, %s138
      %s142 = sphi 0, %s141
      %s158 = sphi 0, %s142
    $region4: #{tpu_custom_call.1} parent=1 // loop_header_branch
      %21 = sbr.rel (%p19) target = $region8
    $region5: #{tpu_custom_call.1} parent=1 // loop_body
      %s23 = ssub.s32 %s18, 1
      %s24 = ssub.s32 %s18, 2
      %s25 = sadd.s32 %s18, 1
      %s26 = ssub.s32 %s18, %s25
      %p27 = scmp.eq.s32.totalorder %s26, 0
      %s29 = sadd.s32 %s28, 1
      %s30 = scalar_select %p27, %s28, %s29
      %p33 = pneg %p27
      %p34 = scmp.eq.s32.totalorder %s18, 1
      %p35 = por %p33, %p34
      %p36 = scmp.ne.s32.totalorder %s28, %s31
      %p37 = scmp.eq.s32.totalorder %s18, 0
      %p38 = por %p36, %p37
      %p39 = scmp.ne.s32.totalorder %s28, %s31
      %p40 = scmp.eq.s32.totalorder %s23, 1
      %p41 = por %p39, %p40
      %p42 = scmp.ne.s32.totalorder %s31, %s32
      %p43 = scmp.eq.s32.totalorder %s23, 0
      %p44 = por %p42, %p43
      %p45 = scmp.ne.s32.totalorder %s31, %s32
      %p46 = scmp.eq.s32.totalorder %s24, 1
      %p47 = por %p45, %p46
      %p49 = scmp.ne.s32.totalorder %s32, %s48
      %p50 = scmp.eq.s32.totalorder %s24, 0
      %p51 = por %p49, %p50
      %s53 = sadd.s32 %s52, 1
      %p56 = scmp.eq.s32.totalorder %s18, 1
      %p57 = scmp.ne.s32.totalorder %s52, %s54
      %p58 = scmp.eq.s32.totalorder %s18, 0
      %p59 = por %p57, %p58
      %p60 = scmp.ne.s32.totalorder %s52, %s54
      %p61 = scmp.eq.s32.totalorder %s23, 1
      %p62 = por %p60, %p61
      %p63 = scmp.ne.s32.totalorder %s54, %s55
      %p64 = scmp.eq.s32.totalorder %s23, 0
      %p65 = por %p63, %p64
      %p66 = scmp.ne.s32.totalorder %s54, %s55
      %p67 = scmp.eq.s32.totalorder %s24, 1
      %p68 = por %p66, %p67
      %p70 = scmp.ne.s32.totalorder %s55, %s69
      %p71 = scmp.eq.s32.totalorder %s24, 0
      %p72 = por %p70, %p71
      %s74 = sadd.s32 %s73, 1
      %p77 = scmp.eq.s32.totalorder %s18, 1
      %p78 = scmp.ne.s32.totalorder %s73, %s75
      %p79 = scmp.eq.s32.totalorder %s18, 0
      %p80 = por %p78, %p79
      %p81 = scmp.ne.s32.totalorder %s73, %s75
      %p82 = scmp.eq.s32.totalorder %s23, 1
      %p83 = por %p81, %p82
      %p84 = scmp.ne.s32.totalorder %s75, %s76
      %p85 = scmp.eq.s32.totalorder %s23, 0
      %p86 = por %p84, %p85
      %p87 = scmp.ne.s32.totalorder %s75, %s76
      %p88 = scmp.eq.s32.totalorder %s24, 1
      %p89 = por %p87, %p88
      %p91 = scmp.ne.s32.totalorder %s76, %s90
      %p92 = scmp.eq.s32.totalorder %s24, 0
      %p93 = por %p91, %p92
      %s95 = sadd.s32 %s94, 1
      %p98 = scmp.eq.s32.totalorder %s18, 1
      %p99 = scmp.ne.s32.totalorder %s94, %s96
      %p100 = scmp.eq.s32.totalorder %s18, 0
      %p101 = por %p99, %p100
      %p102 = scmp.ne.s32.totalorder %s94, %s96
      %p103 = scmp.eq.s32.totalorder %s23, 1
      %p104 = por %p102, %p103
      %p105 = scmp.ne.s32.totalorder %s96, %s97
      %p106 = scmp.eq.s32.totalorder %s23, 0
      %p107 = por %p105, %p106
      %p108 = scmp.ne.s32.totalorder %s96, %s97
      %p109 = scmp.eq.s32.totalorder %s24, 1
      %p110 = por %p108, %p109
      %p112 = scmp.ne.s32.totalorder %s97, %s111
      %p113 = scmp.eq.s32.totalorder %s24, 0
      %p114 = por %p112, %p113
      %s116 = sadd.s32 %s115, 1
      %p119 = scmp.eq.s32.totalorder %s18, 1
      %p120 = scmp.ne.s32.totalorder %s115, %s117
      %p121 = scmp.eq.s32.totalorder %s18, 0
      %p122 = por %p120, %p121
      %p123 = scmp.ne.s32.totalorder %s115, %s117
      %p124 = scmp.eq.s32.totalorder %s23, 1
      %p125 = por %p123, %p124
      %p126 = scmp.ne.s32.totalorder %s117, %s118
      %p127 = scmp.eq.s32.totalorder %s23, 0
      %p128 = por %p126, %p127
      %p129 = scmp.ne.s32.totalorder %s117, %s118
      %p130 = scmp.eq.s32.totalorder %s24, 1
      %p131 = por %p129, %p130
      %p133 = scmp.ne.s32.totalorder %s118, %s132
      %p134 = scmp.eq.s32.totalorder %s24, 0
      %p135 = por %p133, %p134
      %s136 = ssub.s32 %s18, %s25
      %p137 = scmp.eq.s32.totalorder %s136, 0
      %s139 = sadd.s32 %s138, 1
      %s140 = scalar_select %p137, %s138, %s139
      %p143 = pneg %p137
      %p144 = scmp.eq.s32.totalorder %s18, 1
      %p145 = por %p143, %p144
      %p146 = scmp.ne.s32.totalorder %s138, %s141
      %p147 = scmp.eq.s32.totalorder %s18, 0
      %p148 = por %p146, %p147
      %p149 = scmp.ne.s32.totalorder %s138, %s141
      %p150 = scmp.eq.s32.totalorder %s23, 1
      %p151 = por %p149, %p150
      %p152 = scmp.ne.s32.totalorder %s141, %s142
      %p153 = scmp.eq.s32.totalorder %s23, 0
      %p154 = por %p152, %p153
      %p155 = scmp.ne.s32.totalorder %s141, %s142
      %p156 = scmp.eq.s32.totalorder %s24, 1
      %p157 = por %p155, %p156
      %p159 = scmp.ne.s32.totalorder %s142, %s158
      %p160 = scmp.eq.s32.totalorder %s24, 0
      %p161 = por %p159, %p160
      %p162 = scmp.le.s32.totalorder 1, %s18
      %p163 = scmp.lt.s32.totalorder %s18, 3
      %p164 = pnand %p162, %p163
      %p165 = pneg %p164
      // Predicated region
      $region9: #{tpu_custom_call.1} parent=5 // pred_check
        _
      $region10: #{tpu_custom_call.1} parent=5 // pred_check_branch
        %167 = sbr.rel (%p164) target = $region12
      $region11: #{tpu_custom_call.1} parent=5 // pred_region
        %s168 = ssub.s32 %s18, 1
        // Predicated region
        $region13: #{tpu_custom_call.1} parent=11 // pred_check
          %p169 = pneg %p65
        $region14: #{tpu_custom_call.1} parent=11 // pred_check_branch
          %171 = sbr.rel (%p169) target = $region16
        $region15: #{tpu_custom_call.1} parent=11 // pred_region
          %s173 = ssub.s32 64, 64
          %174 = vsyncadd [#allocation6], %s173
          %s176 = sshll.u32 [#allocation5], 4
          %s177 = int_to_ptr.vmem [resolvable:$true] %s176
          %179 = dma.hbm_to_vmem [thread:$0]  %s1, 64, %s177, [#allocation6]
        $region16: #{tpu_custom_call.1} parent=11 // pred_fallthru
          _
        // Predicated region
        $region17: #{tpu_custom_call.1} parent=11 // pred_check
          %p180 = pneg %p86
        $region18: #{tpu_custom_call.1} parent=11 // pred_check_branch
          %182 = sbr.rel (%p180) target = $region20
        $region19: #{tpu_custom_call.1} parent=11 // pred_region
          _
        $region20: #{tpu_custom_call.1} parent=11 // pred_fallthru
          _
        // Predicated region
        $region21: #{tpu_custom_call.1} parent=11 // pred_check
          %p183 = pneg %p107
        $region22: #{tpu_custom_call.1} parent=11 // pred_check_branch
          %185 = sbr.rel (%p183) target = $region24
        $region23: #{tpu_custom_call.1} parent=11 // pred_region
          _
        $region24: #{tpu_custom_call.1} parent=11 // pred_fallthru
          _
        // Predicated region
        $region25: #{tpu_custom_call.1} parent=11 // pred_check
          %p186 = pneg %p128
        $region26: #{tpu_custom_call.1} parent=11 // pred_check_branch
          %188 = sbr.rel (%p186) target = $region28
        $region27: #{tpu_custom_call.1} parent=11 // pred_region
          _
        $region28: #{tpu_custom_call.1} parent=11 // pred_fallthru
          _
      $region12: #{tpu_custom_call.1} parent=5 // pred_fallthru
        _
      %p189 = scmp.lt.s32.totalorder %s18, 2
      // Predicated region
      $region29: #{tpu_custom_call.1} parent=5 // pred_check
        %p190 = pneg %p189
      $region30: #{tpu_custom_call.1} parent=5 // pred_check_branch
        %192 = sbr.rel (%p190) target = $region32
      $region31: #{tpu_custom_call.1} parent=5 // pred_region
        // Predicated region
        $region33: #{tpu_custom_call.1} parent=31 // pred_check
          %p193 = pneg %p38
        $region34: #{tpu_custom_call.1} parent=31 // pred_check_branch
          %195 = sbr.rel (%p193) target = $region36
        $region35: #{tpu_custom_call.1} parent=31 // pred_region
          %s196 = sand.u32 %s28, 1
          %s197 = scalar_lea.sflag [#allocation3], %s196
          %s198 = sand.u32 %s28, 1
          %s199 = smul.addr %s198, 8
          %s200 = scalar_lea.vmem [#allocation2], %s199
          %s202 = ssub.s32 128, 128
          %203 = vsyncadd %s197, %s202
          %s204 = smul.addr %s18, 2
          %s205 = smul.addr %s204, 64
          %s206 = scalar_lea.hbm %s0, %s205
          %s208 = sshll.u32 %s200, 4
          %s209 = int_to_ptr.vmem [resolvable:$true] %s208
          %211 = dma.hbm_to_vmem [thread:$0]  %s206, 128, %s209, %s197
        $region36: #{tpu_custom_call.1} parent=31 // pred_fallthru
          _
      $region32: #{tpu_custom_call.1} parent=5 // pred_fallthru
        _
      %p212 = scmp.le.s32.totalorder 1, %s18
      %p213 = scmp.lt.s32.totalorder %s18, 3
      %p214 = pnand %p212, %p213
      %p215 = pneg %p214
      // Predicated region
      $region37: #{tpu_custom_call.1} parent=5 // pred_check
        _
      $region38: #{tpu_custom_call.1} parent=5 // pred_check_branch
        %217 = sbr.rel (%p214) target = $region40
      $region39: #{tpu_custom_call.1} parent=5 // pred_region
        %s218 = ssub.s32 %s18, 1
        %s219 = sand.u32 %s31, 1
        %s220 = scalar_lea.sflag [#allocation3], %s219
        %s221 = sand.u32 %s31, 1
        %s222 = smul.addr %s221, 8
        %s223 = scalar_lea.vmem [#allocation2], %s222
        // Predicated region
        $region41: #{tpu_custom_call.1} parent=39 // pred_check
          %p224 = pneg %p44
        $region42: #{tpu_custom_call.1} parent=39 // pred_check_branch
          %226 = sbr.rel (%p224) target = $region44
        $region43: #{tpu_custom_call.1} parent=39 // pred_region
          %227 = dma.done %s220, 128
        $region44: #{tpu_custom_call.1} parent=39 // pred_fallthru
          _
        // Predicated region
        $region45: #{tpu_custom_call.1} parent=39 // pred_check
          %p228 = pneg %p65
        $region46: #{tpu_custom_call.1} parent=39 // pred_check_branch
          %230 = sbr.rel (%p228) target = $region48
        $region47: #{tpu_custom_call.1} parent=39 // pred_region
          %231 = dma.done [#allocation6], 64
        $region48: #{tpu_custom_call.1} parent=39 // pred_fallthru
          _
        %s232 = sand.u32 %s31, 1
        %s233 = scalar_lea.sflag [#allocation3], %s232
        %s234 = sand.u32 %s31, 1
        %s235 = smul.addr %s234, 8
        %s236 = scalar_lea.vmem [#allocation2], %s235
        %p237 = pneg %p44
        %p238 = pneg %p41
        %p239 = pneg %p65
        %p240 = pneg %p62
        %p241 = pneg %p86
        %p242 = pneg %p83
        %p243 = pneg %p107
        %p244 = pneg %p104
        %p245 = pneg %p128
        %p246 = pneg %p125
        %p247 = pneg %p154
        %p248 = pneg %p151
        %s249 = sand.u32 %s141, 1
        %s250 = scalar_lea.sflag [#allocation4], %s249
        %s251 = sand.u32 %s141, 1
        %s252 = smul.addr %s251, 8
        %s253 = scalar_lea.vmem [#allocation7], %s252
        %v254 = vld [vmem:[%s223] sm:$0xff]
        %v256 = vcombine.high %v254, %v254
        %vm258 = vcmask 1043456
        %v259 = vsel %vm258, %v254, 0.0
        %v260 = vsel %vm258, %v256, 0.0
        %v261 = vadd.f32 %v259, %v260
        %262 = vadd.xlane.f32.xlu0 %v261
        %v263 = vpop.xlane.xlu0 %262
        %v264 = vld [vmem:[#allocation5] sm:$0xf]
        %v265 = vld [vmem:[%s2] sm:$0x1]
        %v267 = vlaneseq
        %v268 = vand.u32 %v267, 127
        %v269 = vlaneseq
        %v270 = vshrl.u32 %v269, 7
        %v271 = vsub.s32 %v268, %v270
        %v272 = vrot.slane %v263, %v271
        %vm273 = vcmask 31744
        %v274 = vsel %vm273, %v272, 0
        %v277 = vsel %vm258, %v264, 0
        %279 = vmatprep.subr.mxu0 0.0
        %280 = vmatpush1.msra.mxu0 %v277
        %281 = vmatprep.subr.mxu0 0.0
        %282 = vmatpush1.msra.mxu0 0.0
        %283 = vmatprep.subr.mxu0 0.0
        %284 = vmatpush1.msra.mxu0 0.0
        %285 = vmatprep.subr.mxu0 0.0
        %286 = vmatpush1.msra.mxu0 0.0
        %287 = vmatprep.subr.mxu0 0.0
        %288 = vmatpush1.msra.mxu0 0.0
        %289 = vmatprep.subr.mxu0 0.0
        %290 = vmatpush1.msra.mxu0 0.0
        %291 = vmatprep.subr.mxu0 0.0
        %292 = vmatpush1.msra.mxu0 0.0
        %293 = vmatprep.subr.mxu0 0.0
        %294 = vmatpush1.msra.mxu0 0.0
        %295 = vmatprep.subr.mxu0 0.0
        %296 = vmatpush1.msra.mxu0 0.0
        %297 = vmatprep.subr.mxu0 0.0
        %298 = vmatpush1.msra.mxu0 0.0
        %299 = vmatprep.subr.mxu0 0.0
        %300 = vmatpush1.msra.mxu0 0.0
        %301 = vmatprep.subr.mxu0 0.0
        %302 = vmatpush1.msra.mxu0 0.0
        %303 = vmatprep.subr.mxu0 0.0
        %304 = vmatpush1.msra.mxu0 0.0
        %305 = vmatprep.subr.mxu0 0.0
        %306 = vmatpush1.msra.mxu0 0.0
        %307 = vmatprep.subr.mxu0 0.0
        %308 = vmatpush1.msra.mxu0 0.0
        %309 = vmatprep.subr.mxu0 0.0
        %310 = vmatpush1.msra.mxu0 0.0
        %311 = vmatprep.subr.mxu0 0.0
        %312 = vmatpush1.msra.mxu0 0.0
        %313 = vmatprep.subr.mxu0 0.0
        %314 = vmatpush1.msra.mxu0 0.0
        %315 = vmatprep.subr.mxu0 0.0
        %316 = vmatpush1.msra.mxu0 0.0
        %317 = vmatprep.subr.mxu0 0.0
        %318 = vmatpush1.msra.mxu0 0.0
        %319 = vmatprep.subr.mxu0 0.0
        %320 = vmatpush1.msra.mxu0 0.0
        %321 = vmatprep.subr.mxu0 0.0
        %322 = vmatpush1.msra.mxu0 0.0
        %323 = vmatprep.subr.mxu0 0.0
        %324 = vmatpush1.msra.mxu0 0.0
        %325 = vmatprep.subr.mxu0 0.0
        %326 = vmatpush1.msra.mxu0 0.0
        %327 = vmatprep.subr.mxu0 0.0
        %328 = vmatpush1.msra.mxu0 0.0
        %329 = vmatprep.subr.mxu0 0.0
        %330 = vmatpush1.msra.mxu0 0.0
        %331 = vmatprep.subr.mxu0 0.0
        %332 = vmatpush1.msra.mxu0 0.0
        %333 = vmatprep.subr.mxu0 0.0
        %334 = vmatpush1.msra.mxu0 0.0
        %335 = vmatprep.subr.mxu0 0.0
        %336 = vmatpush1.msra.mxu0 0.0
        %337 = vmatprep.subr.mxu0 0.0
        %338 = vmatpush1.msra.mxu0 0.0
        %339 = vmatprep.subr.mxu0 0.0
        %340 = vmatpush1.msra.mxu0 0.0
        %341 = vmatprep.subr.mxu0 0.0
        %342 = vmatpush1.msra.mxu0 0.0
        %343 = vmatprep.mubr.f32.mxu0 0.0
        %344 = vmatmul.mubr.f32.gmra.mrb[0].mxu0 %v274
        %v345 = vpop.f32.mrb[0].mxu0
        %v346 = vadd.f32 %v265, %v345
        %v347 = vpop.f32.mrb[0].mxu0
        %348 = vdwg.mxu0
        %v349 = vmax.f32 %v346, 0.0
        %v350 = vld [vmem:[%s3] sm:$0xf]
        %v351 = vld [vmem:[%s4] sm:$0x1]
        %v353 = vsel %vm273, %v349, 0
        %v356 = vsel %vm258, %v350, 0
        %358 = vmatprep.subr.mxu0 0.0
        %359 = vmatpush1.msra.mxu0 %v356
        %360 = vmatprep.subr.mxu0 0.0
        %361 = vmatpush1.msra.mxu0 0.0
        %362 = vmatprep.subr.mxu0 0.0
        %363 = vmatpush1.msra.mxu0 0.0
        %364 = vmatprep.subr.mxu0 0.0
        %365 = vmatpush1.msra.mxu0 0.0
        %366 = vmatprep.subr.mxu0 0.0
        %367 = vmatpush1.msra.mxu0 0.0
        %368 = vmatprep.subr.mxu0 0.0
        %369 = vmatpush1.msra.mxu0 0.0
        %370 = vmatprep.subr.mxu0 0.0
        %371 = vmatpush1.msra.mxu0 0.0
        %372 = vmatprep.subr.mxu0 0.0
        %373 = vmatpush1.msra.mxu0 0.0
        %374 = vmatprep.subr.mxu0 0.0
        %375 = vmatpush1.msra.mxu0 0.0
        %376 = vmatprep.subr.mxu0 0.0
        %377 = vmatpush1.msra.mxu0 0.0
        %378 = vmatprep.subr.mxu0 0.0
        %379 = vmatpush1.msra.mxu0 0.0
        %380 = vmatprep.subr.mxu0 0.0
        %381 = vmatpush1.msra.mxu0 0.0
        %382 = vmatprep.subr.mxu0 0.0
        %383 = vmatpush1.msra.mxu0 0.0
        %384 = vmatprep.subr.mxu0 0.0
        %385 = vmatpush1.msra.mxu0 0.0
        %386 = vmatprep.subr.mxu0 0.0
        %387 = vmatpush1.msra.mxu0 0.0
        %388 = vmatprep.subr.mxu0 0.0
        %389 = vmatpush1.msra.mxu0 0.0
        %390 = vmatprep.subr.mxu0 0.0
        %391 = vmatpush1.msra.mxu0 0.0
        %392 = vmatprep.subr.mxu0 0.0
        %393 = vmatpush1.msra.mxu0 0.0
        %394 = vmatprep.subr.mxu0 0.0
        %395 = vmatpush1.msra.mxu0 0.0
        %396 = vmatprep.subr.mxu0 0.0
        %397 = vmatpush1.msra.mxu0 0.0
        %398 = vmatprep.subr.mxu0 0.0
        %399 = vmatpush1.msra.mxu0 0.0
        %400 = vmatprep.subr.mxu0 0.0
        %401 = vmatpush1.msra.mxu0 0.0
        %402 = vmatprep.subr.mxu0 0.0
        %403 = vmatpush1.msra.mxu0 0.0
        %404 = vmatprep.subr.mxu0 0.0
        %405 = vmatpush1.msra.mxu0 0.0
        %406 = vmatprep.subr.mxu0 0.0
        %407 = vmatpush1.msra.mxu0 0.0
        %408 = vmatprep.subr.mxu0 0.0
        %409 = vmatpush1.msra.mxu0 0.0
        %410 = vmatprep.subr.mxu0 0.0
        %411 = vmatpush1.msra.mxu0 0.0
        %412 = vmatprep.subr.mxu0 0.0
        %413 = vmatpush1.msra.mxu0 0.0
        %414 = vmatprep.subr.mxu0 0.0
        %415 = vmatpush1.msra.mxu0 0.0
        %416 = vmatprep.subr.mxu0 0.0
        %417 = vmatpush1.msra.mxu0 0.0
        %418 = vmatprep.subr.mxu0 0.0
        %419 = vmatpush1.msra.mxu0 0.0
        %420 = vmatprep.subr.mxu0 0.0
        %421 = vmatpush1.msra.mxu0 0.0
        %422 = vmatprep.mubr.f32.mxu0 0.0
        %423 = vmatmul.mubr.f32.gmra.mrb[0].mxu0 %v353
        %v424 = vpop.f32.mrb[0].mxu0
        %v425 = vadd.f32 %v351, %v424
        %v426 = vpop.f32.mrb[0].mxu0
        %427 = vdwg.mxu0
        %v428 = vxor.u32 %v425, 2147483648
        %v429 = vmul.f32 %v428, 1.442695
        %v430 = vpow.pop %v429
        %v431 = vadd.f32 %v430, 1.0
        %v432 = vrcp.pop %v431
        %v433 = vmul.f32 1.0, %v432
        %v434 = vlaneseq
        %v435 = vshrl.u32 %v434, 7
        %v436 = vsub.s32 0, %v435
        %v437 = vrot.slane %v433, %v436
        %439 = vbcast.lane.b32.xlu0 %v437, 256
        %v440 = vpop.permute.xlu0 %439
        %v443 = vunpack.c.l.s4 839922192
        %v444 = vunpack.c.0.s8 %v443
        %v445 = vlaneseq
        %v446 = vshrl.u32 %v445, 7
        %v447 = vsub.s32 %v444, %v446
        %v448 = vrot.slane %v440, %v447
        %v450 = vmul.f32 %v254, %v448
        %451 = vst [vmem:[%s253] sm:$0xff] %v450
        %s452 = sand.u32 %s141, 1
        %s453 = scalar_lea.sflag [#allocation4], %s452
        %s454 = sand.u32 %s141, 1
        %s455 = smul.addr %s454, 8
        %s456 = scalar_lea.vmem [#allocation7], %s455
        // Predicated region
        $region49: #{tpu_custom_call.1} parent=39 // pred_check
          %p457 = pneg %p151
        $region50: #{tpu_custom_call.1} parent=39 // pred_check_branch
          %459 = sbr.rel (%p457) target = $region52
        $region51: #{tpu_custom_call.1} parent=39 // pred_region
          %s461 = ssub.s32 128, 128
          %462 = vsyncadd %s453, %s461
          %s463 = smul.addr %s23, 2
          %s464 = smul.addr %s463, 64
          %s465 = scalar_lea.hbm %s5, %s464
          %s467 = sshll.u32 %s456, 4
          %s468 = int_to_ptr.vmem [resolvable:$true] %s467
          %470 = dma.vmem_to_hbm [thread:$0]  %s468, 128, %s465, %s453
        $region52: #{tpu_custom_call.1} parent=39 // pred_fallthru
          _
      $region40: #{tpu_custom_call.1} parent=5 // pred_fallthru
        _
      %p471 = scmp.le.s32.totalorder 2, %s18
      // Predicated region
      $region53: #{tpu_custom_call.1} parent=5 // pred_check
        %p472 = pneg %p471
      $region54: #{tpu_custom_call.1} parent=5 // pred_check_branch
        %474 = sbr.rel (%p472) target = $region56
      $region55: #{tpu_custom_call.1} parent=5 // pred_region
        %s475 = ssub.s32 %s18, 2
        // Predicated region
        $region57: #{tpu_custom_call.1} parent=55 // pred_check
          %p476 = pneg %p157
        $region58: #{tpu_custom_call.1} parent=55 // pred_check_branch
          %478 = sbr.rel (%p476) target = $region60
        $region59: #{tpu_custom_call.1} parent=55 // pred_region
          %s479 = sand.u32 %s142, 1
          %s480 = scalar_lea.sflag [#allocation4], %s479
          %s481 = sand.u32 %s142, 1
          %s482 = smul.addr %s481, 8
          %s483 = scalar_lea.vmem [#allocation7], %s482
          %484 = dma.done %s480, 128
        $region60: #{tpu_custom_call.1} parent=55 // pred_fallthru
          _
      $region56: #{tpu_custom_call.1} parent=5 // pred_fallthru
        _
    $region6: #{tpu_custom_call.1} parent=1 // loop_footer
      %s22 = sadd.s32 1, %s18
    $region7: #{tpu_custom_call.1} parent=1 // loop_footer_branch
      %17 = sbr.rel target = $region3
    $region8: #{tpu_custom_call.1} parent=1 // loop_exit
      _
    %485 = vsyncpa [#allocation3], 1
    %s486 = scalar_lea.sflag [#allocation3], 1
    %487 = vsyncpa %s486, 1
    %488 = vsyncpa [#allocation6], 1
    %489 = vsyncpa [#allocation4], 1
    %s490 = scalar_lea.sflag [#allocation4], 1
    %491 = vsyncpa %s490, 1

</llo_original>
